<compile_context>
chip_gen: v5e
topology: v5e:2x2
jax: 0.10.0
libtpu: 0.0.40
codegen_flags: <defaults>
</compile_context>

<pallas_src>
import jax
import jax.numpy as jnp
from jax.experimental import pallas as pl
from jax.experimental.pallas import tpu as pltpu


def _fc_tanh_kernel(x_ref, w_ref, b_ref, o_ref):
    """One (ts, N) output slab for one batch element.

    x_ref: (1, ts, C)  bf16 activations, already (spatial, channel) ordered
    w_ref: (C, N)      bf16 fc weight (in, out) -- constant block, DMA'd once
    b_ref: (1, N)      f32  fc bias              -- constant block, DMA'd once
    o_ref: (1, ts, N)  f32  output tile
    """
    acc = jnp.dot(x_ref[0], w_ref[...], preferred_element_type=jnp.float32)
    o_ref[0] = jnp.tanh(acc + b_ref[...]).astype(o_ref.dtype)


def fc_tanh_spatial(x_bsc, w, b, *, ts_max=512):
    """tanh(x_bsc @ w + b).

    x_bsc: (B, S, C)  activations (spatial-major), any float dtype
    w:     (C, N)     fc weight (in, out)
    b:     (1, N)     fc bias
    returns (B, S, N) float32
    """
    B, S, C = x_bsc.shape
    Cw, N = w.shape
    assert Cw == C, (Cw, C)

    # bf16 operands, f32 accumulation (MXU-native on v5e/v6e/v7x).
    x_bsc = x_bsc.astype(jnp.bfloat16)
    w = w.astype(jnp.bfloat16)
    b = b.astype(jnp.float32).reshape(1, N)

    # Spatial tiling: full-S block when it fits (legal even if S % 8 != 0,
    # no padding / no output slice). Otherwise 512-row tiles, padding S up to
    # a multiple of the tile (NOT of 128, so the tile never degrades).
    if S <= ts_max:
        ts, S_pad = S, S
        # Keep >= 2 parallel programs so v7x's 2 TensorCores both get work.
        if B == 1 and S >= 16 and S % 16 == 0:
            ts = S // 2
    else:
        ts = ts_max                      # multiple of 128 (>=256 for v6e/v7x MXU)
        S_pad = ts * pl.cdiv(S, ts)

    if S_pad != S:
        # Padded rows produce tanh(bias) and are sliced off below.
        x_bsc = jnp.pad(x_bsc, ((0, 0), (0, S_pad - S), (0, 0)))

    grid = (B, S_pad // ts)

    # Weight is fetched once (constant block index) -> count it once.
    cost = pl.CostEstimate(
        flops=2 * B * S_pad * C * N,
        transcendentals=B * S_pad * N,
        bytes_accessed=(2 * B * S_pad * C            # bf16 activations, streamed once
                        + 2 * C * N + 4 * N          # bf16 weight + f32 bias, resident
                        + 4 * B * S_pad * N),        # f32 output
    )

    out = pl.pallas_call(
        _fc_tanh_kernel,
        out_shape=jax.ShapeDtypeStruct((B, S_pad, N), jnp.float32),
        grid_spec=pltpu.PrefetchScalarGridSpec(
            num_scalar_prefetch=0,
            grid=grid,
            in_specs=[
                # One spatial tile, full channel strip (K collapsed: no
                # accumulator scratch, no init/finalize phase).
                pl.BlockSpec((1, ts, C), lambda bb, i: (bb, i, 0)),
                # Constant block index => DMA'd once, resident across the grid.
                pl.BlockSpec((C, N), lambda bb, i: (0, 0)),
                pl.BlockSpec((1, N), lambda bb, i: (0, 0)),
            ],
            out_specs=pl.BlockSpec((1, ts, N), lambda bb, i: (bb, i, 0)),
        ),
        compiler_params=pltpu.CompilerParams(
            dimension_semantics=("parallel", "parallel"),
            # Explicit budget: fits v7x's 64 MiB physical VMEM with headroom,
            # and lifts v5e's 16 MiB default scoped limit.
            vmem_limit_bytes=48 * 1024 * 1024,
        ),
        cost_estimate=cost,
    )(x_bsc, w, b)

    if S_pad != S:
        out = out[:, :S, :]
    return out


class SpatialResnetEncoderPallas:
    """JAX/Pallas equivalent of SpatialResnetEncoder with feats_available=True."""

    def __init__(self, in_features, output_size, key):
        # Matches nn.Linear(in_features, output_size) default init:
        # U(-1/sqrt(in_features), 1/sqrt(in_features)) for weight and bias.
        kw, kb = jax.random.split(key)
        bound = 1.0 / jnp.sqrt(jnp.asarray(in_features, jnp.float32))
        # PyTorch weight is (out, in); stored transposed (in, out) for x @ W.
        self.weight = jax.random.uniform(
            kw, (in_features, output_size), jnp.float32, -bound, bound
        )
        self.bias = jax.random.uniform(
            kb, (1, output_size), jnp.float32, -bound, bound
        )

    def __call__(self, features):
        # features: (B, C, H, W)  NCHW, same as PyTorch.
        B, C, H, W = features.shape
        S = H * W
        # view(B, C, S) is a free reshape.  The PyTorch transpose(1, 2) is a
        # single XLA pass fused with the f32->bf16 operand cast, so the kernel
        # matmul is in the guaranteed-MXU-native (M,K)x(K,N) orientation.
        x_bsc = jnp.transpose(features.reshape(B, C, S), (0, 2, 1)).astype(jnp.bfloat16)
        return fc_tanh_spatial(x_bsc, self.weight, self.bias)   # (B, S, out)


def _reference(features, weight, bias):
    B, C, H, W = features.shape
    S = H * W
    x = jnp.transpose(features.reshape(B, C, S), (0, 2, 1))
    return jnp.tanh(x @ weight + bias[0])


if __name__ == "__main__":
    # Small shapes consistent with the forward pass:
    # batch=2, channels (fc in_features)=256, spatial=16x16 -> S=256, output=128.
    B, C, Hs, Ws = 2, 256, 16, 16
    output_size = 128

    key = jax.random.PRNGKey(0)
    k_feat, k_params = jax.random.split(key)
    features = jax.random.normal(k_feat, (B, C, Hs, Ws), jnp.float32)

    enc = SpatialResnetEncoderPallas(C, output_size, k_params)
    fwd = jax.jit(enc.__call__)

    out = jax.block_until_ready(fwd(features))

    ref = _reference(features, enc.weight, enc.bias)
    assert out.shape == (B, Hs * Ws, output_size), out.shape
    # bf16 operands / f32 accumulation: tolerance relaxed vs. the f32 reference.
    assert jnp.allclose(out, ref, atol=2e-2, rtol=2e-2), "mismatch vs reference"

    print("KERNEL_OK")
</pallas_src>

<mosaic_0001>
module attributes {stable_mosaic.version = 11 : i64} {
  func.func @_fc_tanh_kernel(%arg0: i32, %arg1: i32, %arg2: memref<1x256x256xbf16, #tpu.memory_space<vmem>>, %arg3: memref<256x128xbf16, #tpu.memory_space<vmem>>, %arg4: memref<1x128xf32, #tpu.memory_space<vmem>>, %arg5: memref<1x256x128xf32, #tpu.memory_space<vmem>>) attributes {dimension_semantics = [#tpu.dimension_semantics<parallel>, #tpu.dimension_semantics<parallel>], iteration_bounds = array<i64: 2, 1>, scalar_prefetch = 0 : i64, scratch_operands = 0 : i64, tpu.core_type = #tpu.core_type<tc>, window_params = [{transform_indices = @transform_0, window_bounds = array<i64: 1, 256, 256>}, {pipeline_mode = #tpu.pipeline_mode<synchronous>, transform_indices = @transform_1, window_bounds = array<i64: 256, 128>}, {pipeline_mode = #tpu.pipeline_mode<synchronous>, transform_indices = @transform_2, window_bounds = array<i64: 1, 128>}, {transform_indices = @transform_3, window_bounds = array<i64: 1, 256, 128>}]} {
    %c0 = arith.constant 0 : index
    %c0_0 = arith.constant 0 : index
    %c0_1 = arith.constant 0 : index
    %0 = vector.load %arg2[%c0, %c0_0, %c0_1] : memref<1x256x256xbf16, #tpu.memory_space<vmem>>, vector<1x256x256xbf16>
    %1 = vector.shape_cast %0 : vector<1x256x256xbf16> to vector<256x256xbf16>
    %c0_2 = arith.constant 0 : index
    %c0_3 = arith.constant 0 : index
    %2 = vector.load %arg3[%c0_2, %c0_3] : memref<256x128xbf16, #tpu.memory_space<vmem>>, vector<256x128xbf16>
    %cst = arith.constant dense<0.000000e+00> : vector<256x128xf32>
    %3 = tpu.matmul %1, %2, %cst {dimension_numbers = #tpu.dot_dimension_numbers<[1], [0], [0], [1], [0, 0, 1, 1], [], []>} : vector<256x256xbf16>, vector<256x128xbf16>, vector<256x128xf32> -> vector<256x128xf32>
    %c0_4 = arith.constant 0 : index
    %c0_5 = arith.constant 0 : index
    %4 = vector.load %arg4[%c0_4, %c0_5] : memref<1x128xf32, #tpu.memory_space<vmem>>, vector<1x128xf32>
    %5 = vector.broadcast %4 : vector<1x128xf32> to vector<256x128xf32>
    %6 = arith.addf %3, %5 : vector<256x128xf32>
    %7 = math.tanh %6 : vector<256x128xf32>
    %c0_6 = arith.constant 0 : index
    %c0_7 = arith.constant 0 : index
    %c0_8 = arith.constant 0 : index
    %8 = vector.load %arg5[%c0_6, %c0_7, %c0_8] : memref<1x256x128xf32, #tpu.memory_space<vmem>>, vector<1x256x128xf32>
    %9 = vector.shape_cast %8 : vector<1x256x128xf32> to vector<256x128xf32>
    %10 = vector.shape_cast %7 : vector<256x128xf32> to vector<1x256x128xf32>
    tpu.vector_store %arg5[%c0_6, %c0_7, %c0_8], %10 {strides = array<i32>} : memref<1x256x128xf32, #tpu.memory_space<vmem>>, vector<1x256x128xf32>,
    return
  }
  func.func @transform_0(%arg0: i32, %arg1: i32) -> (i32, i32, i32) {
    %c0_i32 = arith.constant 0 : i32
    %c0_i32_0 = arith.constant 0 : i32
    return %arg0, %arg1, %c0_i32 : i32, i32, i32
  }
  func.func @transform_1(%arg0: i32, %arg1: i32) -> (i32, i32) {
    %c0_i32 = arith.constant 0 : i32
    %c0_i32_0 = arith.constant 0 : i32
    %c0_i32_1 = arith.constant 0 : i32
    return %c0_i32, %c0_i32_0 : i32, i32
  }
  func.func @transform_2(%arg0: i32, %arg1: i32) -> (i32, i32) {
    %c0_i32 = arith.constant 0 : i32
    %c0_i32_0 = arith.constant 0 : i32
    %c0_i32_1 = arith.constant 0 : i32
    return %c0_i32, %c0_i32_0 : i32, i32
  }
  func.func @transform_3(%arg0: i32, %arg1: i32) -> (i32, i32, i32) {
    %c0_i32 = arith.constant 0 : i32
    %c0_i32_0 = arith.constant 0 : i32
    return %arg0, %arg1, %c0_i32 : i32, i32, i32
  }
}

</mosaic_0001>

<llo_original>
// kernel: a_call__.1
$region0: #{a_call__.1}
  #allocation0 [shape = 'u32[]', space=smem, size = 0x4, offset = 0x4, fixed_abs, tag = 'smem constant byte address 0x4 - core index']
  #allocation1 [shape = 'u32[72,128]{1,0:T(1,128)}', space=vmem, size = 0x9000, scoped, tag = 'internal scratch']
  %s0 = inlined_call_operand.vmem [shape: bf16[2,256,256], index: 0, kind: input, shape index: {}]
  %s1 = inlined_call_operand.vmem [shape: bf16[256,128], index: 1, kind: input, shape index: {}]
  %s2 = inlined_call_operand.vmem [shape: f32[1,128], index: 2, kind: input, shape index: {}]
  %s3 = inlined_call_operand.hbm [shape: f32[2,256,128], index: 3, kind: output, shape index: {}]
  %s4 = sld [smem:[#allocation0]]
  $region45: #{a_call__.1} parent=0
    _
  %s6 = ssub.s32 1, %s4
  %s7 = scalar_select 0, %s6, %s4
  $region1: #{a_call__.1} parent=0
    #allocation2 [shape = 'u8[262144]{0}', space=vmem, size = 0x40000, scoped, tag = 'output window, operand 0']
    #allocation3 [shape = 's32[2]{0}', space=sflag, size = 0x8, scoped, tag = 'scoped memory for a_call__.1']
    %8 = vsyncpa [#allocation3], 0
    %s9 = scalar_lea.sflag [#allocation3], 1
    %10 = vsyncpa %s9, 0
    loop: start=0, step=1, limit=4
    $region2: #{a_call__.1} parent=1 // loop_pre_header
      _
    $region3: #{a_call__.1} parent=1 // loop_header
      %s12 = sphi 0, %s16
      %p13 = scmp.ge.s32.totalorder %s12, 4
      %s19 = sphi 0, %s31
      %s20 = sphi 0, %s27
      %s21 = sphi 0, %s19
      %s22 = sphi 0, %s20
      %s23 = sphi 0, %s21
      %s24 = sphi 0, %s22
      %s36 = sphi 0, %s38
      %s39 = sphi 0, %s36
      %s40 = sphi 0, %s39
      %s56 = sphi 0, %s40
      %s60 = sphi 0, %s60
      %s62 = sphi 0, %s60
      %s63 = sphi 0, %s62
      %s77 = sphi 0, %s63
      %s81 = sphi 0, %s81
      %s83 = sphi 0, %s81
      %s84 = sphi 0, %s83
      %s98 = sphi 0, %s84
      %s106 = sphi 0, %s108
      %s109 = sphi 0, %s106
      %s110 = sphi 0, %s109
      %s126 = sphi 0, %s110
    $region4: #{a_call__.1} parent=1 // loop_header_branch
      %15 = sbr.rel (%p13) target = $region8
    $region5: #{a_call__.1} parent=1 // loop_body
      %s17 = ssub.s32 %s12, 1
      %s18 = ssub.s32 %s12, 2
      %s25 = sadd.s32 1, %s20
      %p26 = scmp.ge.s32.totalorder %s25, 1
      %s27 = scalar_select %p26, 0, %s25
      %s28 = sadd.s32 1, %s19
      %s29 = scalar_select %p26, %s28, %s19
      %p30 = scmp.ge.s32.totalorder %s29, 2
      %s31 = scalar_select %p30, 0, %s29
      %s32 = ssub.s32 %s19, %s31
      %s33 = ssub.s32 %s20, %s27
      %s34 = sor.u32 %s32, %s33
      %p35 = scmp.eq.s32.totalorder %s34, 0
      %s37 = sadd.s32 %s36, 1
      %s38 = scalar_select %p35, %s36, %s37
      %p41 = pneg %p35
      %p42 = scmp.eq.s32.totalorder %s12, 1
      %p43 = por %p41, %p42
      %p44 = scmp.ne.s32.totalorder %s36, %s39
      %p45 = scmp.eq.s32.totalorder %s12, 0
      %p46 = por %p44, %p45
      %p47 = scmp.ne.s32.totalorder %s36, %s39
      %p48 = scmp.eq.s32.totalorder %s17, 1
      %p49 = por %p47, %p48
      %p50 = scmp.ne.s32.totalorder %s39, %s40
      %p51 = scmp.eq.s32.totalorder %s17, 0
      %p52 = por %p50, %p51
      %p53 = scmp.ne.s32.totalorder %s39, %s40
      %p54 = scmp.eq.s32.totalorder %s18, 1
      %p55 = por %p53, %p54
      %p57 = scmp.ne.s32.totalorder %s40, %s56
      %p58 = scmp.eq.s32.totalorder %s18, 0
      %p59 = por %p57, %p58
      %s61 = sadd.s32 %s60, 1
      %p64 = scmp.eq.s32.totalorder %s12, 1
      %p65 = scmp.ne.s32.totalorder %s60, %s62
      %p66 = scmp.eq.s32.totalorder %s12, 0
      %p67 = por %p65, %p66
      %p68 = scmp.ne.s32.totalorder %s60, %s62
      %p69 = scmp.eq.s32.totalorder %s17, 1
      %p70 = por %p68, %p69
      %p71 = scmp.ne.s32.totalorder %s62, %s63
      %p72 = scmp.eq.s32.totalorder %s17, 0
      %p73 = por %p71, %p72
      %p74 = scmp.ne.s32.totalorder %s62, %s63
      %p75 = scmp.eq.s32.totalorder %s18, 1
      %p76 = por %p74, %p75
      %p78 = scmp.ne.s32.totalorder %s63, %s77
      %p79 = scmp.eq.s32.totalorder %s18, 0
      %p80 = por %p78, %p79
      %s82 = sadd.s32 %s81, 1
      %p85 = scmp.eq.s32.totalorder %s12, 1
      %p86 = scmp.ne.s32.totalorder %s81, %s83
      %p87 = scmp.eq.s32.totalorder %s12, 0
      %p88 = por %p86, %p87
      %p89 = scmp.ne.s32.totalorder %s81, %s83
      %p90 = scmp.eq.s32.totalorder %s17, 1
      %p91 = por %p89, %p90
      %p92 = scmp.ne.s32.totalorder %s83, %s84
      %p93 = scmp.eq.s32.totalorder %s17, 0
      %p94 = por %p92, %p93
      %p95 = scmp.ne.s32.totalorder %s83, %s84
      %p96 = scmp.eq.s32.totalorder %s18, 1
      %p97 = por %p95, %p96
      %p99 = scmp.ne.s32.totalorder %s84, %s98
      %p100 = scmp.eq.s32.totalorder %s18, 0
      %p101 = por %p99, %p100
      %s102 = ssub.s32 %s19, %s31
      %s103 = ssub.s32 %s20, %s27
      %s104 = sor.u32 %s102, %s103
      %p105 = scmp.eq.s32.totalorder %s104, 0
      %s107 = sadd.s32 %s106, 1
      %s108 = scalar_select %p105, %s106, %s107
      %p111 = pneg %p105
      %p112 = scmp.eq.s32.totalorder %s12, 1
      %p113 = por %p111, %p112
      %p114 = scmp.ne.s32.totalorder %s106, %s109
      %p115 = scmp.eq.s32.totalorder %s12, 0
      %p116 = por %p114, %p115
      %p117 = scmp.ne.s32.totalorder %s106, %s109
      %p118 = scmp.eq.s32.totalorder %s17, 1
      %p119 = por %p117, %p118
      %p120 = scmp.ne.s32.totalorder %s109, %s110
      %p121 = scmp.eq.s32.totalorder %s17, 0
      %p122 = por %p120, %p121
      %p123 = scmp.ne.s32.totalorder %s109, %s110
      %p124 = scmp.eq.s32.totalorder %s18, 1
      %p125 = por %p123, %p124
      %p127 = scmp.ne.s32.totalorder %s110, %s126
      %p128 = scmp.eq.s32.totalorder %s18, 0
      %p129 = por %p127, %p128
      %p130 = scmp.le.s32.totalorder 1, %s12
      %p131 = scmp.lt.s32.totalorder %s12, 3
      %p132 = pnand %p130, %p131
      %p133 = pneg %p132
      // Predicated region
      $region9: #{a_call__.1} parent=5 // pred_check
        _
      $region10: #{a_call__.1} parent=5 // pred_check_branch
        %135 = sbr.rel (%p132) target = $region12
      $region11: #{a_call__.1} parent=5 // pred_region
        %s136 = ssub.s32 %s12, 1
        // Predicated region
        $region13: #{a_call__.1} parent=11 // pred_check
          %p137 = pneg %p73
        $region14: #{a_call__.1} parent=11 // pred_check_branch
          %139 = sbr.rel (%p137) target = $region16
        $region15: #{a_call__.1} parent=11 // pred_region
          _
        $region16: #{a_call__.1} parent=11 // pred_fallthru
          _
        // Predicated region
        $region17: #{a_call__.1} parent=11 // pred_check
          %p140 = pneg %p94
        $region18: #{a_call__.1} parent=11 // pred_check_branch
          %142 = sbr.rel (%p140) target = $region20
        $region19: #{a_call__.1} parent=11 // pred_region
          _
        $region20: #{a_call__.1} parent=11 // pred_fallthru
          _
      $region12: #{a_call__.1} parent=5 // pred_fallthru
        _
      %p143 = scmp.lt.s32.totalorder %s12, 2
      // Predicated region
      $region21: #{a_call__.1} parent=5 // pred_check
        %p144 = pneg %p143
      $region22: #{a_call__.1} parent=5 // pred_check_branch
        %146 = sbr.rel (%p144) target = $region24
      $region23: #{a_call__.1} parent=5 // pred_region
        // Predicated region
        $region25: #{a_call__.1} parent=23 // pred_check
          %p147 = pneg %p46
        $region26: #{a_call__.1} parent=23 // pred_check_branch
          %149 = sbr.rel (%p147) target = $region28
        $region27: #{a_call__.1} parent=23 // pred_region
          %s150 = smul.u32 32, %s20
          %p151 = scmp.lt.s32.totalorder %s19, 1
          %s152 = scalar_select %p151, %s19, 1
          %p153 = scmp.lt.s32.totalorder %s150, 31
          %s154 = scalar_select %p153, %s150, 31
          %s155 = smul.addr %s154, 2
          %s156 = smul.addr %s152, 64
          %s157 = sadd.s32 %s155, %s156
          %s158 = smul.addr %s157, 4
          %s159 = scalar_lea.vmem %s0, %s158
          %s160 = smul.u32 32, %s20
        $region28: #{a_call__.1} parent=23 // pred_fallthru
          _
      $region24: #{a_call__.1} parent=5 // pred_fallthru
        _
      %p161 = scmp.le.s32.totalorder 1, %s12
      %p162 = scmp.lt.s32.totalorder %s12, 3
      %p163 = pnand %p161, %p162
      %p164 = pneg %p163
      // Predicated region
      $region29: #{a_call__.1} parent=5 // pred_check
        _
      $region30: #{a_call__.1} parent=5 // pred_check_branch
        %166 = sbr.rel (%p163) target = $region32
      $region31: #{a_call__.1} parent=5 // pred_region
        %s167 = ssub.s32 %s12, 1
        %s168 = smul.u32 32, %s22
        %p169 = scmp.lt.s32.totalorder %s21, 1
        %s170 = scalar_select %p169, %s21, 1
        %p171 = scmp.lt.s32.totalorder %s168, 31
        %s172 = scalar_select %p171, %s168, 31
        %s173 = smul.addr %s172, 2
        %s174 = smul.addr %s170, 64
        %s175 = sadd.s32 %s173, %s174
        %s176 = smul.addr %s175, 4
        %s177 = scalar_lea.vmem %s0, %s176
        %p178 = pneg %p52
        %p179 = pneg %p49
        %p180 = pneg %p73
        %p181 = pneg %p70
        %p182 = pneg %p94
        %p183 = pneg %p91
        %p184 = pneg %p122
        %p185 = pneg %p119
        %s186 = sand.u32 %s109, 1
        %s187 = scalar_lea.sflag [#allocation3], %s186
        %s188 = sand.u32 %s109, 1
        %s189 = smul.addr %s188, 256
        %s190 = scalar_lea.vmem [#allocation2], %s189
        %s191 = smul.u32 32, %s22
        %p192 = scmp.lt.s32.totalorder %s21, 1
        %s193 = scalar_select %p192, %s21, 1
        %p194 = scmp.lt.s32.totalorder %s191, 31
        %s195 = scalar_select %p194, %s191, 31
        %s196 = smul.addr %s195, 2
        %s197 = smul.addr %s193, 64
        %s198 = sadd.s32 %s196, %s197
        %s199 = smul.addr %s198, 4
        %s200 = scalar_lea.vmem %s0, %s199
        %s201 = smul.u32 32, %s22
        %s202 = smul.u32 32, %s22
        %v203 = vld [vmem:[%s200] sm:$0xff]
        %v204 = vld [vmem:[%s200 + $0x8] sm:$0xff]
        %v205 = vld [vmem:[%s200 + $0x10] sm:$0xff]
        %v206 = vld [vmem:[%s200 + $0x18] sm:$0xff]
        %v207 = vld [vmem:[%s200 + $0x20] sm:$0xff]
        %v208 = vld [vmem:[%s200 + $0x28] sm:$0xff]
        %v209 = vld [vmem:[%s200 + $0x30] sm:$0xff]
        %v210 = vld [vmem:[%s200 + $0x38] sm:$0xff]
        %v211 = vld [vmem:[%s200 + $0x40] sm:$0xff]
        %v212 = vld [vmem:[%s200 + $0x48] sm:$0xff]
        %v213 = vld [vmem:[%s200 + $0x50] sm:$0xff]
        %v214 = vld [vmem:[%s200 + $0x58] sm:$0xff]
        %v215 = vld [vmem:[%s200 + $0x60] sm:$0xff]
        %v216 = vld [vmem:[%s200 + $0x68] sm:$0xff]
        %v217 = vld [vmem:[%s200 + $0x70] sm:$0xff]
        %v218 = vld [vmem:[%s200 + $0x78] sm:$0xff]
        %v219 = vld [vmem:[%s200 + $0x80] sm:$0xff]
        %v220 = vld [vmem:[%s200 + $0x88] sm:$0xff]
        %v221 = vld [vmem:[%s200 + $0x90] sm:$0xff]
        %v222 = vld [vmem:[%s200 + $0x98] sm:$0xff]
        %v223 = vld [vmem:[%s200 + $0xa0] sm:$0xff]
        %v224 = vld [vmem:[%s200 + $0xa8] sm:$0xff]
        %v225 = vld [vmem:[%s200 + $0xb0] sm:$0xff]
        %v226 = vld [vmem:[%s200 + $0xb8] sm:$0xff]
        %v227 = vld [vmem:[%s200 + $0xc0] sm:$0xff]
        %v228 = vld [vmem:[%s200 + $0xc8] sm:$0xff]
        %v229 = vld [vmem:[%s200 + $0xd0] sm:$0xff]
        %v230 = vld [vmem:[%s200 + $0xd8] sm:$0xff]
        %v231 = vld [vmem:[%s200 + $0xe0] sm:$0xff]
        %v232 = vld [vmem:[%s200 + $0xe8] sm:$0xff]
        %v233 = vld [vmem:[%s200 + $0xf0] sm:$0xff]
        %v234 = vld [vmem:[%s200 + $0xf8] sm:$0xff]
        %v235 = vld [vmem:[%s1] sm:$0xf]
        %v236 = vld [vmem:[%s1 + $0x4] sm:$0xf]
        %v237 = vld [vmem:[%s1 + $0x8] sm:$0xf]
        %v238 = vld [vmem:[%s1 + $0xc] sm:$0xf]
        %v239 = vld [vmem:[%s1 + $0x10] sm:$0xf]
        %v240 = vld [vmem:[%s1 + $0x14] sm:$0xf]
        %v241 = vld [vmem:[%s1 + $0x18] sm:$0xf]
        %v242 = vld [vmem:[%s1 + $0x1c] sm:$0xf]
        %v243 = vld [vmem:[%s1 + $0x20] sm:$0xf]
        %v244 = vld [vmem:[%s1 + $0x24] sm:$0xf]
        %v245 = vld [vmem:[%s1 + $0x28] sm:$0xf]
        %v246 = vld [vmem:[%s1 + $0x2c] sm:$0xf]
        %v247 = vld [vmem:[%s1 + $0x30] sm:$0xf]
        %v248 = vld [vmem:[%s1 + $0x34] sm:$0xf]
        %v249 = vld [vmem:[%s1 + $0x38] sm:$0xf]
        %v250 = vld [vmem:[%s1 + $0x3c] sm:$0xf]
        %v251 = vld [vmem:[%s1 + $0x40] sm:$0xf]
        %v252 = vld [vmem:[%s1 + $0x44] sm:$0xf]
        %v253 = vld [vmem:[%s1 + $0x48] sm:$0xf]
        %v254 = vld [vmem:[%s1 + $0x4c] sm:$0xf]
        %v255 = vld [vmem:[%s1 + $0x50] sm:$0xf]
        %v256 = vld [vmem:[%s1 + $0x54] sm:$0xf]
        %v257 = vld [vmem:[%s1 + $0x58] sm:$0xf]
        %v258 = vld [vmem:[%s1 + $0x5c] sm:$0xf]
        %v259 = vld [vmem:[%s1 + $0x60] sm:$0xf]
        %v260 = vld [vmem:[%s1 + $0x64] sm:$0xf]
        %v261 = vld [vmem:[%s1 + $0x68] sm:$0xf]
        %v262 = vld [vmem:[%s1 + $0x6c] sm:$0xf]
        %v263 = vld [vmem:[%s1 + $0x70] sm:$0xf]
        %v264 = vld [vmem:[%s1 + $0x74] sm:$0xf]
        %v265 = vld [vmem:[%s1 + $0x78] sm:$0xf]
        %v266 = vld [vmem:[%s1 + $0x7c] sm:$0xf]
        %v267 = vld [vmem:[%s2] sm:$0x1]
        %v269 = vperm.slane %v267, 0
        %v303 = vunpack.c.l.b16 %v203
        %v304 = vunpack.c.h.b16 %v203
        %v305 = vunpack.c.l.b16 %v204
        %v306 = vunpack.c.h.b16 %v204
        %v307 = vunpack.c.l.b16 %v205
        %v308 = vunpack.c.h.b16 %v205
        %v309 = vunpack.c.l.b16 %v206
        %v310 = vunpack.c.h.b16 %v206
        %v311 = vunpack.c.l.b16 %v207
        %v312 = vunpack.c.h.b16 %v207
        %v313 = vunpack.c.l.b16 %v208
        %v314 = vunpack.c.h.b16 %v208
        %v315 = vunpack.c.l.b16 %v209
        %v316 = vunpack.c.h.b16 %v209
        %v317 = vunpack.c.l.b16 %v210
        %v318 = vunpack.c.h.b16 %v210
        %v319 = vunpack.c.l.b16 %v211
        %v320 = vunpack.c.h.b16 %v211
        %v321 = vunpack.c.l.b16 %v212
        %v322 = vunpack.c.h.b16 %v212
        %v323 = vunpack.c.l.b16 %v213
        %v324 = vunpack.c.h.b16 %v213
        %v325 = vunpack.c.l.b16 %v214
        %v326 = vunpack.c.h.b16 %v214
        %v327 = vunpack.c.l.b16 %v215
        %v328 = vunpack.c.h.b16 %v215
        %v329 = vunpack.c.l.b16 %v216
        %v330 = vunpack.c.h.b16 %v216
        %v331 = vunpack.c.l.b16 %v217
        %v332 = vunpack.c.h.b16 %v217
        %v333 = vunpack.c.l.b16 %v218
        %v334 = vunpack.c.h.b16 %v218
        %v335 = vunpack.c.l.b16 %v219
        %v336 = vunpack.c.h.b16 %v219
        %v337 = vunpack.c.l.b16 %v220
        %v338 = vunpack.c.h.b16 %v220
        %v339 = vunpack.c.l.b16 %v221
        %v340 = vunpack.c.h.b16 %v221
        %v341 = vunpack.c.l.b16 %v222
        %v342 = vunpack.c.h.b16 %v222
        %v343 = vunpack.c.l.b16 %v223
        %v344 = vunpack.c.h.b16 %v223
        %v345 = vunpack.c.l.b16 %v224
        %v346 = vunpack.c.h.b16 %v224
        %v347 = vunpack.c.l.b16 %v225
        %v348 = vunpack.c.h.b16 %v225
        %v349 = vunpack.c.l.b16 %v226
        %v350 = vunpack.c.h.b16 %v226
        %v351 = vunpack.c.l.b16 %v227
        %v352 = vunpack.c.h.b16 %v227
        %v353 = vunpack.c.l.b16 %v228
        %v354 = vunpack.c.h.b16 %v228
        %v355 = vunpack.c.l.b16 %v229
        %v356 = vunpack.c.h.b16 %v229
        %v357 = vunpack.c.l.b16 %v230
        %v358 = vunpack.c.h.b16 %v230
        %v359 = vunpack.c.l.b16 %v231
        %v360 = vunpack.c.h.b16 %v231
        %v361 = vunpack.c.l.b16 %v232
        %v362 = vunpack.c.h.b16 %v232
        %v363 = vunpack.c.l.b16 %v233
        %v364 = vunpack.c.h.b16 %v233
        %v365 = vunpack.c.l.b16 %v234
        %v366 = vunpack.c.h.b16 %v234
        %v367 = vpack.c.b16 %v305, %v303
        %v368 = vpack.c.b16 %v306, %v304
        %v369 = vpack.c.b16 %v309, %v307
        %v370 = vpack.c.b16 %v310, %v308
        %v371 = vpack.c.b16 %v313, %v311
        %v372 = vpack.c.b16 %v314, %v312
        %v373 = vpack.c.b16 %v317, %v315
        %v374 = vpack.c.b16 %v318, %v316
        %v375 = vpack.c.b16 %v321, %v319
        %v376 = vpack.c.b16 %v322, %v320
        %v377 = vpack.c.b16 %v325, %v323
        %v378 = vpack.c.b16 %v326, %v324
        %v379 = vpack.c.b16 %v329, %v327
        %v380 = vpack.c.b16 %v330, %v328
        %v381 = vpack.c.b16 %v333, %v331
        %v382 = vpack.c.b16 %v334, %v332
        %v383 = vpack.c.b16 %v337, %v335
        %v384 = vpack.c.b16 %v338, %v336
        %v385 = vpack.c.b16 %v341, %v339
        %v386 = vpack.c.b16 %v342, %v340
        %v387 = vpack.c.b16 %v345, %v343
        %v388 = vpack.c.b16 %v346, %v344
        %v389 = vpack.c.b16 %v349, %v347
        %v390 = vpack.c.b16 %v350, %v348
        %v391 = vpack.c.b16 %v353, %v351
        %v392 = vpack.c.b16 %v354, %v352
        %v393 = vpack.c.b16 %v357, %v355
        %v394 = vpack.c.b16 %v358, %v356
        %v395 = vpack.c.b16 %v361, %v359
        %v396 = vpack.c.b16 %v362, %v360
        %v397 = vpack.c.b16 %v365, %v363
        %v398 = vpack.c.b16 %v366, %v364
        %v463 = vunpack.c.l.b16 %v235
        %v464 = vunpack.c.l.b16 %v236
        %v465 = vunpack.c.l.b16 %v237
        %v466 = vunpack.c.l.b16 %v238
        %v467 = vunpack.c.l.b16 %v239
        %v468 = vunpack.c.l.b16 %v240
        %v469 = vunpack.c.l.b16 %v241
        %v470 = vunpack.c.l.b16 %v242
        %v471 = vunpack.c.l.b16 %v243
        %v472 = vunpack.c.l.b16 %v244
        %v473 = vunpack.c.l.b16 %v245
        %v474 = vunpack.c.l.b16 %v246
        %v475 = vunpack.c.l.b16 %v247
        %v476 = vunpack.c.l.b16 %v248
        %v477 = vunpack.c.l.b16 %v249
        %v478 = vunpack.c.l.b16 %v250
        %v479 = vunpack.c.l.b16 %v251
        %v480 = vunpack.c.l.b16 %v252
        %v481 = vunpack.c.l.b16 %v253
        %v482 = vunpack.c.l.b16 %v254
        %v483 = vunpack.c.l.b16 %v255
        %v484 = vunpack.c.l.b16 %v256
        %v485 = vunpack.c.l.b16 %v257
        %v486 = vunpack.c.l.b16 %v258
        %v487 = vunpack.c.l.b16 %v259
        %v488 = vunpack.c.l.b16 %v260
        %v489 = vunpack.c.l.b16 %v261
        %v490 = vunpack.c.l.b16 %v262
        %v491 = vunpack.c.l.b16 %v263
        %v492 = vunpack.c.l.b16 %v264
        %v493 = vunpack.c.l.b16 %v265
        %v494 = vunpack.c.l.b16 %v266
        %v495 = vpack.c.b16 %v464, %v463
        %v496 = vpack.c.b16 %v466, %v465
        %v497 = vpack.c.b16 %v468, %v467
        %v498 = vpack.c.b16 %v470, %v469
        %v499 = vpack.c.b16 %v472, %v471
        %v500 = vpack.c.b16 %v474, %v473
        %v501 = vpack.c.b16 %v476, %v475
        %v502 = vpack.c.b16 %v478, %v477
        %v503 = vpack.c.b16 %v480, %v479
        %v504 = vpack.c.b16 %v482, %v481
        %v505 = vpack.c.b16 %v484, %v483
        %v506 = vpack.c.b16 %v486, %v485
        %v507 = vpack.c.b16 %v488, %v487
        %v508 = vpack.c.b16 %v490, %v489
        %v509 = vpack.c.b16 %v492, %v491
        %v510 = vpack.c.b16 %v494, %v493
        %527 = vmatpush.bf16.msra.mxu0 %v502
        %528 = vmatpush.bf16.msra.mxu0 %v501
        %529 = vmatpush.bf16.msra.mxu0 %v500
        %530 = vmatpush.bf16.msra.mxu0 %v499
        %531 = vmatpush.bf16.msra.mxu0 %v498
        %532 = vmatpush.bf16.msra.mxu0 %v497
        %533 = vmatpush.bf16.msra.mxu0 %v496
        %534 = vmatpush.bf16.msra.mxu0 %v495
        %535 = vmatmul.bf16.gmra.mxu0 %v367
        %v536 = vpop.f32.mrf.mxu0
        %v537 = vadd.f32 %v269, %v536
        %v538 = vpop.f32.mrf.mxu0
        %v539 = vadd.f32 %v269, %v538
        %540 = vmatmul.bf16.gmra.mxu0 %v369
        %v541 = vpop.f32.mrf.mxu0
        %v542 = vadd.f32 %v269, %v541
        %v543 = vpop.f32.mrf.mxu0
        %v544 = vadd.f32 %v269, %v543
        %545 = vmatmul.bf16.gmra.mxu0 %v371
        %v546 = vpop.f32.mrf.mxu0
        %v547 = vadd.f32 %v269, %v546
        %v548 = vpop.f32.mrf.mxu0
        %v549 = vadd.f32 %v269, %v548
        %550 = vmatmul.bf16.gmra.mxu0 %v373
        %v551 = vpop.f32.mrf.mxu0
        %v552 = vadd.f32 %v269, %v551
        %v553 = vpop.f32.mrf.mxu0
        %v554 = vadd.f32 %v269, %v553
        %555 = vmatmul.bf16.gmra.mxu0 %v375
        %v556 = vpop.f32.mrf.mxu0
        %v557 = vadd.f32 %v269, %v556
        %v558 = vpop.f32.mrf.mxu0
        %v559 = vadd.f32 %v269, %v558
        %560 = vmatmul.bf16.gmra.mxu0 %v377
        %v561 = vpop.f32.mrf.mxu0
        %v562 = vadd.f32 %v269, %v561
        %v563 = vpop.f32.mrf.mxu0
        %v564 = vadd.f32 %v269, %v563
        %565 = vmatmul.bf16.gmra.mxu0 %v379
        %v566 = vpop.f32.mrf.mxu0
        %v567 = vadd.f32 %v269, %v566
        %v568 = vpop.f32.mrf.mxu0
        %v569 = vadd.f32 %v269, %v568
        %570 = vmatmul.bf16.gmra.mxu0 %v381
        %v571 = vpop.f32.mrf.mxu0
        %v572 = vadd.f32 %v269, %v571
        %v573 = vpop.f32.mrf.mxu0
        %v574 = vadd.f32 %v269, %v573
        %575 = vmatmul.bf16.gmra.mxu0 %v383
        %v576 = vpop.f32.mrf.mxu0
        %v577 = vadd.f32 %v269, %v576
        %v578 = vpop.f32.mrf.mxu0
        %v579 = vadd.f32 %v269, %v578
        %580 = vmatmul.bf16.gmra.mxu0 %v385
        %v581 = vpop.f32.mrf.mxu0
        %v582 = vadd.f32 %v269, %v581
        %v583 = vpop.f32.mrf.mxu0
        %v584 = vadd.f32 %v269, %v583
        %585 = vmatmul.bf16.gmra.mxu0 %v387
        %v586 = vpop.f32.mrf.mxu0
        %v587 = vadd.f32 %v269, %v586
        %v588 = vpop.f32.mrf.mxu0
        %v589 = vadd.f32 %v269, %v588
        %590 = vmatmul.bf16.gmra.mxu0 %v389
        %v591 = vpop.f32.mrf.mxu0
        %v592 = vadd.f32 %v269, %v591
        %v593 = vpop.f32.mrf.mxu0
        %v594 = vadd.f32 %v269, %v593
        %595 = vmatmul.bf16.gmra.mxu0 %v391
        %v596 = vpop.f32.mrf.mxu0
        %v597 = vadd.f32 %v269, %v596
        %v598 = vpop.f32.mrf.mxu0
        %v599 = vadd.f32 %v269, %v598
        %600 = vmatmul.bf16.gmra.mxu0 %v393
        %v601 = vpop.f32.mrf.mxu0
        %v602 = vadd.f32 %v269, %v601
        %v603 = vpop.f32.mrf.mxu0
        %v604 = vadd.f32 %v269, %v603
        %605 = vmatmul.bf16.gmra.mxu0 %v395
        %v606 = vpop.f32.mrf.mxu0
        %v607 = vadd.f32 %v269, %v606
        %v608 = vpop.f32.mrf.mxu0
        %v609 = vadd.f32 %v269, %v608
        %610 = vmatmul.bf16.gmra.mxu0 %v397
        %v611 = vpop.f32.mrf.mxu0
        %v612 = vadd.f32 %v269, %v611
        %v613 = vpop.f32.mrf.mxu0
        %v614 = vadd.f32 %v269, %v613
        %615 = vdwg.mxu0
        %616 = vmatpush.bf16.msra.mxu0 %v510
        %617 = vmatpush.bf16.msra.mxu0 %v509
        %618 = vmatpush.bf16.msra.mxu0 %v508
        %619 = vmatpush.bf16.msra.mxu0 %v507
        %620 = vmatpush.bf16.msra.mxu0 %v506
        %621 = vmatpush.bf16.msra.mxu0 %v505
        %622 = vmatpush.bf16.msra.mxu0 %v504
        %623 = vmatpush.bf16.msra.mxu0 %v503
        %624 = vmatmul.bf16.gmra.mxu0 %v368
        %v625 = vpop.f32.mrf.mxu0
        %v626 = vadd.f32 %v537, %v625
        %v627 = vpop.f32.mrf.mxu0
        %v628 = vadd.f32 %v539, %v627
        %629 = vmatmul.bf16.gmra.mxu0 %v370
        %v630 = vpop.f32.mrf.mxu0
        %v631 = vadd.f32 %v542, %v630
        %v632 = vpop.f32.mrf.mxu0
        %v633 = vadd.f32 %v544, %v632
        %634 = vmatmul.bf16.gmra.mxu0 %v372
        %v635 = vpop.f32.mrf.mxu0
        %v636 = vadd.f32 %v547, %v635
        %v637 = vpop.f32.mrf.mxu0
        %v638 = vadd.f32 %v549, %v637
        %639 = vmatmul.bf16.gmra.mxu0 %v374
        %v640 = vpop.f32.mrf.mxu0
        %v641 = vadd.f32 %v552, %v640
        %v642 = vpop.f32.mrf.mxu0
        %v643 = vadd.f32 %v554, %v642
        %644 = vmatmul.bf16.gmra.mxu0 %v376
        %v645 = vpop.f32.mrf.mxu0
        %v646 = vadd.f32 %v557, %v645
        %v647 = vpop.f32.mrf.mxu0
        %v648 = vadd.f32 %v559, %v647
        %649 = vmatmul.bf16.gmra.mxu0 %v378
        %v650 = vpop.f32.mrf.mxu0
        %v651 = vadd.f32 %v562, %v650
        %v652 = vpop.f32.mrf.mxu0
        %v653 = vadd.f32 %v564, %v652
        %654 = vmatmul.bf16.gmra.mxu0 %v380
        %v655 = vpop.f32.mrf.mxu0
        %v656 = vadd.f32 %v567, %v655
        %v657 = vpop.f32.mrf.mxu0
        %v658 = vadd.f32 %v569, %v657
        %659 = vmatmul.bf16.gmra.mxu0 %v382
        %v660 = vpop.f32.mrf.mxu0
        %v661 = vadd.f32 %v572, %v660
        %v662 = vpop.f32.mrf.mxu0
        %v663 = vadd.f32 %v574, %v662
        %664 = vmatmul.bf16.gmra.mxu0 %v384
        %v665 = vpop.f32.mrf.mxu0
        %v666 = vadd.f32 %v577, %v665
        %v667 = vpop.f32.mrf.mxu0
        %v668 = vadd.f32 %v579, %v667
        %669 = vmatmul.bf16.gmra.mxu0 %v386
        %v670 = vpop.f32.mrf.mxu0
        %v671 = vadd.f32 %v582, %v670
        %v672 = vpop.f32.mrf.mxu0
        %v673 = vadd.f32 %v584, %v672
        %674 = vmatmul.bf16.gmra.mxu0 %v388
        %v675 = vpop.f32.mrf.mxu0
        %v676 = vadd.f32 %v587, %v675
        %v677 = vpop.f32.mrf.mxu0
        %v678 = vadd.f32 %v589, %v677
        %679 = vmatmul.bf16.gmra.mxu0 %v390
        %v680 = vpop.f32.mrf.mxu0
        %v681 = vadd.f32 %v592, %v680
        %v682 = vpop.f32.mrf.mxu0
        %v683 = vadd.f32 %v594, %v682
        %684 = vmatmul.bf16.gmra.mxu0 %v392
        %v685 = vpop.f32.mrf.mxu0
        %v686 = vadd.f32 %v597, %v685
        %v687 = vpop.f32.mrf.mxu0
        %v688 = vadd.f32 %v599, %v687
        %689 = vmatmul.bf16.gmra.mxu0 %v394
        %v690 = vpop.f32.mrf.mxu0
        %v691 = vadd.f32 %v602, %v690
        %v692 = vpop.f32.mrf.mxu0
        %v693 = vadd.f32 %v604, %v692
        %694 = vmatmul.bf16.gmra.mxu0 %v396
        %v695 = vpop.f32.mrf.mxu0
        %v696 = vadd.f32 %v607, %v695
        %v697 = vpop.f32.mrf.mxu0
        %v698 = vadd.f32 %v609, %v697
        %699 = vmatmul.bf16.gmra.mxu0 %v398
        %v700 = vpop.f32.mrf.mxu0
        %v701 = vadd.f32 %v612, %v700
        %v702 = vpop.f32.mrf.mxu0
        %v703 = vadd.f32 %v614, %v702
        %704 = vdwg.mxu0
        %v705 = vtanh.pop %v626
        %v706 = vtanh.pop %v628
        %v707 = vtanh.pop %v631
        %v708 = vtanh.pop %v633
        %v709 = vtanh.pop %v636
        %v710 = vtanh.pop %v638
        %v711 = vtanh.pop %v641
        %v712 = vtanh.pop %v643
        %v713 = vtanh.pop %v646
        %v714 = vtanh.pop %v648
        %v715 = vtanh.pop %v651
        %v716 = vtanh.pop %v653
        %v717 = vtanh.pop %v656
        %v718 = vtanh.pop %v658
        %v719 = vtanh.pop %v661
        %v720 = vtanh.pop %v663
        %v721 = vtanh.pop %v666
        %v722 = vtanh.pop %v668
        %v723 = vtanh.pop %v671
        %v724 = vtanh.pop %v673
        %v725 = vtanh.pop %v676
        %v726 = vtanh.pop %v678
        %v727 = vtanh.pop %v681
        %v728 = vtanh.pop %v683
        %v729 = vtanh.pop %v686
        %v730 = vtanh.pop %v688
        %v731 = vtanh.pop %v691
        %v732 = vtanh.pop %v693
        %v733 = vtanh.pop %v696
        %v734 = vtanh.pop %v698
        %v735 = vtanh.pop %v701
        %v736 = vtanh.pop %v703
        %737 = vst [vmem:[%s190] sm:$0xff] %v705
        %738 = vst [vmem:[%s190 + $0x8] sm:$0xff] %v706
        %739 = vst [vmem:[%s190 + $0x10] sm:$0xff] %v707
        %740 = vst [vmem:[%s190 + $0x18] sm:$0xff] %v708
        %741 = vst [vmem:[%s190 + $0x20] sm:$0xff] %v709
        %742 = vst [vmem:[%s190 + $0x28] sm:$0xff] %v710
        %743 = vst [vmem:[%s190 + $0x30] sm:$0xff] %v711
        %744 = vst [vmem:[%s190 + $0x38] sm:$0xff] %v712
        %745 = vst [vmem:[%s190 + $0x40] sm:$0xff] %v713
        %746 = vst [vmem:[%s190 + $0x48] sm:$0xff] %v714
        %747 = vst [vmem:[%s190 + $0x50] sm:$0xff] %v715
        %748 = vst [vmem:[%s190 + $0x58] sm:$0xff] %v716
        %749 = vst [vmem:[%s190 + $0x60] sm:$0xff] %v717
        %750 = vst [vmem:[%s190 + $0x68] sm:$0xff] %v718
        %751 = vst [vmem:[%s190 + $0x70] sm:$0xff] %v719
        %752 = vst [vmem:[%s190 + $0x78] sm:$0xff] %v720
        %753 = vst [vmem:[%s190 + $0x80] sm:$0xff] %v721
        %754 = vst [vmem:[%s190 + $0x88] sm:$0xff] %v722
        %755 = vst [vmem:[%s190 + $0x90] sm:$0xff] %v723
        %756 = vst [vmem:[%s190 + $0x98] sm:$0xff] %v724
        %757 = vst [vmem:[%s190 + $0xa0] sm:$0xff] %v725
        %758 = vst [vmem:[%s190 + $0xa8] sm:$0xff] %v726
        %759 = vst [vmem:[%s190 + $0xb0] sm:$0xff] %v727
        %760 = vst [vmem:[%s190 + $0xb8] sm:$0xff] %v728
        %761 = vst [vmem:[%s190 + $0xc0] sm:$0xff] %v729
        %762 = vst [vmem:[%s190 + $0xc8] sm:$0xff] %v730
        %763 = vst [vmem:[%s190 + $0xd0] sm:$0xff] %v731
        %764 = vst [vmem:[%s190 + $0xd8] sm:$0xff] %v732
        %765 = vst [vmem:[%s190 + $0xe0] sm:$0xff] %v733
        %766 = vst [vmem:[%s190 + $0xe8] sm:$0xff] %v734
        %767 = vst [vmem:[%s190 + $0xf0] sm:$0xff] %v735
        %768 = vst [vmem:[%s190 + $0xf8] sm:$0xff] %v736
        %s769 = sand.u32 %s109, 1
        %s770 = scalar_lea.sflag [#allocation3], %s769
        %s771 = sand.u32 %s109, 1
        %s772 = smul.addr %s771, 256
        %s773 = scalar_lea.vmem [#allocation2], %s772
        // Predicated region
        $region33: #{a_call__.1} parent=31 // pred_check
          %p774 = pneg %p119
        $region34: #{a_call__.1} parent=31 // pred_check_branch
          %776 = sbr.rel (%p774) target = $region36
        $region35: #{a_call__.1} parent=31 // pred_region
          %s777 = smul.u32 32, %s22
          %779 = vsyncadd %s770, 0
          %s780 = smul.addr %s21, 32
          %s781 = sadd.s32 %s777, %s780
          %s782 = smul.addr %s781, 8
          %s783 = scalar_lea.hbm %s3, %s782
          %s784 = sshll.u32 %s773, 4
          %s785 = int_to_ptr.vmem [resolvable:$true] %s784
          %s786 = sshll.u32 %s783, 4
          %s787 = int_to_ptr.hbm [resolvable:$true] %s786
          %792 = dma.vmem_to_hbm [thread:$0]  %s785, 4096, %s787, %s770, 128, 128, 8
        $region36: #{a_call__.1} parent=31 // pred_fallthru
          _
      $region32: #{a_call__.1} parent=5 // pred_fallthru
        _
      %p793 = scmp.le.s32.totalorder 2, %s12
      // Predicated region
      $region37: #{a_call__.1} parent=5 // pred_check
        %p794 = pneg %p793
      $region38: #{a_call__.1} parent=5 // pred_check_branch
        %796 = sbr.rel (%p794) target = $region40
      $region39: #{a_call__.1} parent=5 // pred_region
        %s797 = ssub.s32 %s12, 2
        // Predicated region
        $region41: #{a_call__.1} parent=39 // pred_check
          %p798 = pneg %p125
        $region42: #{a_call__.1} parent=39 // pred_check_branch
          %800 = sbr.rel (%p798) target = $region44
        $region43: #{a_call__.1} parent=39 // pred_region
          %s801 = sand.u32 %s110, 1
          %s802 = scalar_lea.sflag [#allocation3], %s801
          %s803 = sand.u32 %s110, 1
          %s804 = smul.addr %s803, 256
          %s805 = scalar_lea.vmem [#allocation2], %s804
          %807 = dma.done %s802, 4096
        $region44: #{a_call__.1} parent=39 // pred_fallthru
          _
      $region40: #{a_call__.1} parent=5 // pred_fallthru
        _
    $region6: #{a_call__.1} parent=1 // loop_footer
      %s16 = sadd.s32 1, %s12
    $region7: #{a_call__.1} parent=1 // loop_footer_branch
      %11 = sbr.rel target = $region3
    $region8: #{a_call__.1} parent=1 // loop_exit
      _
    %808 = vsyncpa [#allocation3], 1
    %s809 = scalar_lea.sflag [#allocation3], 1
    %810 = vsyncpa %s809, 1

</llo_original>
